<compile_context>
chip_gen: v5e
topology: v5e:2x2
jax: 0.10.0
libtpu: 0.0.40
codegen_flags: <defaults>
</compile_context>

<pallas_src>
import functools

import jax
import jax.numpy as jnp
from jax.experimental import pallas as pl
from jax.experimental.pallas import tpu as pltpu


# ---------------------------------------------------------------------------
# VMEM budgeting / tiling helpers
# ---------------------------------------------------------------------------
def _ceil_to(x, m):
    return -(-x // m) * m


def _default_vmem_limit():
    """Scoped-VMEM limit derived from the actual chip (v5e/v6e: 128 MiB,
    v7x: 64 MiB per TensorCore): ~70% of physical, capped at 96 MiB."""
    cap = 128 * 1024 * 1024
    try:  # trace-time hardware query; falls back cleanly off-TPU / older jax
        cap = int(pltpu.get_tpu_info().vmem_capacity_bytes)
    except Exception:
        pass
    return max(16 * 1024 * 1024, min(int(cap * 0.70), 96 * 1024 * 1024))


def _pick_tile_and_pad(hw, limit, *, slack=0.05):
    """Pick a multiple-of-128 HW tile (<= `limit` lane-elements) and the padded
    HW it implies.  Among tiles whose padded footprint ceil(hw/t)*t is within
    `slack` of the minimum achievable, pick the largest tile (fewest grid
    steps / least per-step overhead).  Guarantees t % 128 == 0 and
    hw_pad % t == 0, so there is never a ragged last tile."""
    hw128 = _ceil_to(hw, 128)
    limit = max(128, min((limit // 128) * 128, hw128))
    best_cost = None
    t = 128
    while t <= limit:
        cost = _ceil_to(hw, t)
        if best_cost is None or cost < best_cost:
            best_cost = cost
        t += 128
    best_t = 128
    t = 128
    while t <= limit:
        if _ceil_to(hw, t) <= best_cost * (1.0 + slack):
            best_t = t
        t += 128
    return best_t, _ceil_to(hw, best_t)


def _largest_divisor_tile(hw_pad, limit):
    """Largest multiple-of-128 tile <= limit that divides hw_pad."""
    limit = max(128, min((limit // 128) * 128, hw_pad))
    best = 128
    t = 128
    while t <= limit:
        if hw_pad % t == 0:
            best = t
        t += 128
    return best


def _leaky(x, slope=0.1):
    return jnp.where(x >= 0, x, slope * x)


# ---------------------------------------------------------------------------
# Kernel 1: streaming global-average-pool partial sums
#   psum[b*SPLIT + s] = sum over this split's HW tiles of sum_lanes(f1 + f2)
# The per-(b,s) output block is resident across the reduction axis, so it IS
# the f32 accumulator (init at t==0).  The lane reduction lowers to cheap VPU
# adds across lane groups + one small XLU reduce; only a single f1+f2 / f32
# temporary of the tile is live (no MXU push of a degenerate (THW,1) RHS).
# ---------------------------------------------------------------------------
def pool_kernel(f1_ref, f2_ref, psum_ref):
    @pl.when(pl.program_id(2) == 0)
    def _():
        psum_ref[...] = jnp.zeros_like(psum_ref)

    fs = (f1_ref[0] + f2_ref[0]).astype(jnp.float32)          # (C, THW)
    psum_ref[0] += jnp.sum(fs, axis=-1, keepdims=True)        # (C, 1)


# ---------------------------------------------------------------------------
# Kernel 2: per-pixel hot path (streamed over HW tiles)
#   v = f1*a1 + f2*a2 ; out = leaky(Wout_scaled @ v + shift)
# ---------------------------------------------------------------------------
def fuse_kernel(f1_ref, f2_ref, a1_ref, a2_ref, wout_ref, sh_ref, o_ref, *,
                vpu_conv):
    f1 = f1_ref[0]                                            # (C, THW)
    f2 = f2_ref[0]
    a1 = a1_ref[0].astype(f1.dtype)                           # (C, 1) gates
    a2 = a2_ref[0].astype(f1.dtype)
    v = f1 * a1 + f2 * a2                                     # gated fuse
    if vpu_conv:
        # Tiny C: a (C,C)@(C,THW) matmul uses a sliver of the MXU and wastes
        # sublanes; run the 1x1 conv as C unrolled broadcast-FMAs on the VPU
        # with f32 accumulation instead.
        w = wout_ref[...]
        C = v.shape[0]
        acc = None
        for c in range(C):
            term = (w[:, c:c + 1].astype(jnp.float32)
                    * v[c:c + 1, :].astype(jnp.float32))      # (C, THW)
            acc = term if acc is None else acc + term
        y = acc + sh_ref[...]
    else:
        y = jnp.dot(wout_ref[...], v,
                    preferred_element_type=jnp.float32) + sh_ref[...]
    o_ref[0] = _leaky(y).astype(o_ref.dtype)                  # shift + LeakyReLU


# ---------------------------------------------------------------------------
# Wrapper
# ---------------------------------------------------------------------------
def sk_block_forward(feat1, feat2, params, *, hw_tile=None, vmem_limit=None):
    """feat1, feat2: NCHW arrays of identical shape (B, C, H, W)."""
    assert feat1.shape == feat2.shape
    B, C, H, W = feat1.shape
    HW = H * W
    dt = feat1.dtype
    in_bytes = jnp.dtype(dt).itemsize
    c_pad = max(8, _ceil_to(C, 8))

    if vmem_limit is None:
        vmem_limit = _default_vmem_limit()
    budget = int(vmem_limit * 0.9)          # headroom for small operands etc.

    # Live VMEM bytes per lane-element used to bound each kernel's HW tile:
    #   fuse : f1,f2,out double-buffered + v temp + f32 y/product temps
    #   pool : f1,f2 double-buffered + add temp + f32 cast temp
    fuse_bytes = c_pad * (7 * in_bytes + 12)
    pool_bytes = c_pad * (5 * in_bytes + 8)

    if hw_tile is not None:
        assert hw_tile % 128 == 0, "hw_tile must be a multiple of 128"
        fuse_t = pool_t = hw_tile
        hw_pad = _ceil_to(HW, hw_tile)
    else:
        fuse_t, hw_pad = _pick_tile_and_pad(HW, budget // fuse_bytes)
        pool_t = _largest_divisor_tile(hw_pad, budget // pool_bytes)

    f1 = feat1.reshape(B, C, HW)      # free reshapes, no transpose
    f2 = feat2.reshape(B, C, HW)
    if hw_pad != HW:                  # ragged HW: zero-pad to a tile multiple
        f1 = jnp.pad(f1, ((0, 0), (0, 0), (0, hw_pad - HW)))
        f2 = jnp.pad(f2, ((0, 0), (0, 0), (0, hw_pad - HW)))

    # ---- pass 1: streaming global-average-pool partial sums ----------------
    n_pool = hw_pad // pool_t
    n_split = 2 if (n_pool % 2 == 0 and n_pool >= 2) else 1   # v7x megacore
    tps = n_pool // n_split                                   # tiles per split

    psum = pl.pallas_call(
        pool_kernel,
        out_shape=jax.ShapeDtypeStruct((B * n_split, C, 1), jnp.float32),
        grid=(B, n_split, tps),
        in_specs=[
            pl.BlockSpec((1, C, pool_t), lambda b, s, t: (b, 0, s * tps + t)),
            pl.BlockSpec((1, C, pool_t), lambda b, s, t: (b, 0, s * tps + t)),
        ],
        out_specs=pl.BlockSpec((1, C, 1),
                               lambda b, s, t: (b * n_split + s, 0, 0)),
        compiler_params=pltpu.CompilerParams(
            dimension_semantics=("parallel", "parallel", "arbitrary"),
            vmem_limit_bytes=vmem_limit),
    )(f1, f2)

    # ---- gate math: (B, C)-sized, plain JAX f32 (negligible vs HBM passes) -
    pooled = psum[..., 0].reshape(B, n_split, C).sum(axis=1) / float(HW)
    z = _leaky(pooled @ params["wfc_cs"].T + params["fc_shift"])   # (B, MID)
    x1 = z @ params["w1"].T + params["b1"]
    x2 = z @ params["w2"].T + params["b2"]
    m = jnp.maximum(x1, x2)
    e1 = jnp.exp(x1 - m)
    e2 = jnp.exp(x2 - m)
    inv = 1.0 / (e1 + e2)
    a1 = (e1 * inv)[:, :, None]                                    # (B, C, 1)
    a2 = (e2 * inv)[:, :, None]

    # ---- pass 2: gated fuse + 1x1 conv + folded BN + LeakyReLU -------------
    n_fuse = hw_pad // fuse_t
    wout = params["wout_s"].astype(dt)       # bf16 inputs -> bf16 MXU operands
    out = pl.pallas_call(
        functools.partial(fuse_kernel, vpu_conv=(C <= 16)),
        out_shape=jax.ShapeDtypeStruct((B, C, hw_pad), dt),
        grid=(B, n_fuse),
        in_specs=[
            pl.BlockSpec((1, C, fuse_t), lambda b, t: (b, 0, t)),
            pl.BlockSpec((1, C, fuse_t), lambda b, t: (b, 0, t)),
            pl.BlockSpec((1, C, 1), lambda b, t: (b, 0, 0)),
            pl.BlockSpec((1, C, 1), lambda b, t: (b, 0, 0)),
            pl.BlockSpec((C, C), lambda b, t: (0, 0)),
            pl.BlockSpec((C, 1), lambda b, t: (0, 0)),
        ],
        out_specs=pl.BlockSpec((1, C, fuse_t), lambda b, t: (b, 0, t)),
        compiler_params=pltpu.CompilerParams(
            dimension_semantics=("parallel", "parallel"),
            vmem_limit_bytes=vmem_limit),
    )(f1, f2, a1, a2, wout, params["out_shift_c"])

    if hw_pad != HW:
        out = out[:, :, :HW]
    return out.reshape(B, C, H, W)


# ---------------------------------------------------------------------------
# Parameters: raw (PyTorch-shaped) init + folding into kernel layout
# ---------------------------------------------------------------------------
def init_params(key, in_chan, mid_chan):
    ks = jax.random.split(key, 14)
    n = jax.random.normal
    return dict(
        # fc: Conv2d(in, mid, k=1, bias=False) weight (mid, in); SyncBN(mid)
        wfc=n(ks[0], (mid_chan, in_chan), jnp.float32) * 0.1,
        fc_gamma=1.0 + 0.1 * n(ks[1], (mid_chan,), jnp.float32),
        fc_beta=0.1 * n(ks[2], (mid_chan,), jnp.float32),
        fc_mean=0.05 * n(ks[3], (mid_chan,), jnp.float32),
        fc_var=1.0 + 0.1 * jnp.abs(n(ks[4], (mid_chan,), jnp.float32)),
        # fc1 / fc2: Linear(mid, in) with bias  (weights are (out, in))
        w1=n(ks[5], (in_chan, mid_chan), jnp.float32) * 0.1,
        b1=0.1 * n(ks[6], (in_chan,), jnp.float32),
        w2=n(ks[7], (in_chan, mid_chan), jnp.float32) * 0.1,
        b2=0.1 * n(ks[8], (in_chan,), jnp.float32),
        # conv_out: Conv2d(in, in, k=1, bias=False) weight (out, in); SyncBN(in)
        wout=n(ks[9], (in_chan, in_chan), jnp.float32) * 0.1,
        out_gamma=1.0 + 0.1 * n(ks[10], (in_chan,), jnp.float32),
        out_beta=0.1 * n(ks[11], (in_chan,), jnp.float32),
        out_mean=0.05 * n(ks[12], (in_chan,), jnp.float32),
        out_var=1.0 + 0.1 * jnp.abs(n(ks[13], (in_chan,), jnp.float32)),
    )


def prepare_params(raw, eps=1e-5):
    """Fold eval-mode BN into the 1x1 conv weights."""
    fc_scale = raw["fc_gamma"] / jnp.sqrt(raw["fc_var"] + eps)
    fc_shift = raw["fc_beta"] - raw["fc_mean"] * fc_scale
    out_scale = raw["out_gamma"] / jnp.sqrt(raw["out_var"] + eps)
    out_shift = raw["out_beta"] - raw["out_mean"] * out_scale
    return dict(
        wfc_cs=raw["wfc"] * fc_scale[:, None],        # (mid, C)
        fc_shift=fc_shift,                            # (mid,)
        w1=raw["w1"], b1=raw["b1"],                   # (C, mid), (C,)
        w2=raw["w2"], b2=raw["b2"],
        wout_s=raw["wout"] * out_scale[:, None],      # (C, C)
        out_shift_c=out_shift[:, None],               # (C, 1) for the kernel
    )


# Pure-JAX reference on the RAW (unfolded) params, mirroring the PyTorch forward.
def sk_block_reference(feat1, feat2, raw, eps=1e-5):
    s = jnp.mean(feat1 + feat2, axis=(2, 3))                       # (B, C)
    z = s @ raw["wfc"].T                                           # 1x1 conv
    z = (z - raw["fc_mean"]) / jnp.sqrt(raw["fc_var"] + eps) * raw["fc_gamma"] \
        + raw["fc_beta"]
    z = jnp.where(z >= 0, z, 0.1 * z)
    x1 = z @ raw["w1"].T + raw["b1"]
    x2 = z @ raw["w2"].T + raw["b2"]
    a = jax.nn.softmax(jnp.stack([x1, x2], axis=1), axis=1)        # (B, 2, C)
    a1 = a[:, 0, :][:, :, None, None]
    a2 = a[:, 1, :][:, :, None, None]
    v = feat1 * a1 + feat2 * a2
    y = jnp.einsum("dc,bchw->bdhw", raw["wout"], v)
    y = (y - raw["out_mean"][None, :, None, None]) \
        / jnp.sqrt(raw["out_var"] + eps)[None, :, None, None] \
        * raw["out_gamma"][None, :, None, None] \
        + raw["out_beta"][None, :, None, None]
    return jnp.where(y >= 0, y, 0.1 * y)


if __name__ == "__main__":
    key = jax.random.PRNGKey(0)
    k1, k2, kp = jax.random.split(key, 3)
    B, C, H, W = 2, 4, 16, 16      # in_chan = 4
    MID = 8                        # mid_chan = 8

    feat1 = jax.random.normal(k1, (B, C, H, W), jnp.float32)
    feat2 = jax.random.normal(k2, (B, C, H, W), jnp.float32)
    raw = init_params(kp, C, MID)
    params = prepare_params(raw)
    ref = sk_block_reference(feat1, feat2, raw)

    # 1) Default path (generation-aware tile; single tile here).
    out = jax.block_until_ready(sk_block_forward(feat1, feat2, params))
    assert out.shape == (B, C, H, W), out.shape
    err = float(jnp.max(jnp.abs(out - ref)))
    assert jnp.allclose(out, ref, rtol=2e-4, atol=1e-4), f"max_err={err}"

    # 2) Multi-tile path: exercises streamed pooling + the 2-way split
    #    (HW=256, T=128 -> 2 tiles, SPLIT=2).
    out2 = jax.block_until_ready(sk_block_forward(feat1, feat2, params, hw_tile=128))
    err2 = float(jnp.max(jnp.abs(out2 - ref)))
    assert jnp.allclose(out2, ref, rtol=2e-4, atol=1e-4), f"max_err={err2}"

    # 3) Ragged HW (9x9=81, no multiple-of-128 divisor): exercises the
    #    zero-pad path for realistic CNN resolutions.
    g1 = jax.random.normal(jax.random.PRNGKey(7), (1, C, 9, 9), jnp.float32)
    g2 = jax.random.normal(jax.random.PRNGKey(8), (1, C, 9, 9), jnp.float32)
    ref3 = sk_block_reference(g1, g2, raw)
    out3 = jax.block_until_ready(sk_block_forward(g1, g2, params))
    err3 = float(jnp.max(jnp.abs(out3 - ref3)))
    assert out3.shape == (1, C, 9, 9)
    assert jnp.allclose(out3, ref3, rtol=2e-4, atol=1e-4), f"max_err={err3}"

    # 4) bf16 path (memory-bound block -> halving HBM bytes is the big lever).
    f1b = feat1.astype(jnp.bfloat16)
    f2b = feat2.astype(jnp.bfloat16)
    refb = sk_block_reference(f1b.astype(jnp.float32), f2b.astype(jnp.float32), raw)
    outb = jax.block_until_ready(sk_block_forward(f1b, f2b, params))
    assert outb.dtype == jnp.bfloat16 and outb.shape == (B, C, H, W)
    errb = float(jnp.max(jnp.abs(outb.astype(jnp.float32) - refb)))
    assert jnp.allclose(outb.astype(jnp.float32), refb, rtol=1e-1, atol=1e-1), \
        f"bf16 max_err={errb}"

    print("KERNEL_OK")
</pallas_src>

<mosaic_0001>
module attributes {stable_mosaic.version = 11 : i64} {
  func.func @pool_kernel(%arg0: i32, %arg1: i32, %arg2: i32, %arg3: memref<1x4x256xf32, #tpu.memory_space<vmem>>, %arg4: memref<1x4x256xf32, #tpu.memory_space<vmem>>, %arg5: memref<1x4x1xf32, #tpu.memory_space<vmem>>) attributes {dimension_semantics = [#tpu.dimension_semantics<parallel>, #tpu.dimension_semantics<parallel>, #tpu.dimension_semantics<arbitrary>], iteration_bounds = array<i64: 2, 1, 1>, scalar_prefetch = 0 : i64, scratch_operands = 0 : i64, tpu.core_type = #tpu.core_type<tc>, window_params = [{transform_indices = @transform_0, window_bounds = array<i64: 1, 4, 256>}, {transform_indices = @transform_1, window_bounds = array<i64: 1, 4, 256>}, {transform_indices = @transform_2, window_bounds = array<i64: 1, 4, 1>}]} {
    %c0_i32 = arith.constant 0 : i32
    %0 = arith.cmpi eq, %arg2, %c0_i32 : i32
    %1 = arith.extui %0 : i1 to i32
    %c0_i32_0 = arith.constant 0 : i32
    %2 = arith.cmpi ne, %1, %c0_i32_0 : i32
    scf.if %2 {
      %cst_12 = arith.constant 0.000000e+00 : f32
      %16 = vector.broadcast %cst_12 : f32 to vector<1x4x1xf32>
      %c0_13 = arith.constant 0 : index
      %c0_14 = arith.constant 0 : index
      %c0_15 = arith.constant 0 : index
      %17 = vector.load %arg5[%c0_13, %c0_14, %c0_15] : memref<1x4x1xf32, #tpu.memory_space<vmem>>, vector<1x4x1xf32>
      tpu.vector_store %arg5[%c0_13, %c0_14, %c0_15], %16 {strides = array<i32>} : memref<1x4x1xf32, #tpu.memory_space<vmem>>, vector<1x4x1xf32>,
    } else {
    }
    %c0 = arith.constant 0 : index
    %c0_1 = arith.constant 0 : index
    %c0_2 = arith.constant 0 : index
    %3 = vector.load %arg3[%c0, %c0_1, %c0_2] : memref<1x4x256xf32, #tpu.memory_space<vmem>>, vector<1x4x256xf32>
    %4 = vector.shape_cast %3 : vector<1x4x256xf32> to vector<4x256xf32>
    %c0_3 = arith.constant 0 : index
    %c0_4 = arith.constant 0 : index
    %c0_5 = arith.constant 0 : index
    %5 = vector.load %arg4[%c0_3, %c0_4, %c0_5] : memref<1x4x256xf32, #tpu.memory_space<vmem>>, vector<1x4x256xf32>
    %6 = vector.shape_cast %5 : vector<1x4x256xf32> to vector<4x256xf32>
    %7 = arith.addf %4, %6 : vector<4x256xf32>
    %c0_6 = arith.constant 0 : index
    %c0_7 = arith.constant 0 : index
    %c0_8 = arith.constant 0 : index
    %8 = vector.load %arg5[%c0_6, %c0_7, %c0_8] : memref<1x4x1xf32, #tpu.memory_space<vmem>>, vector<1x4x1xf32>
    %9 = vector.shape_cast %8 : vector<1x4x1xf32> to vector<4x1xf32>
    %cst = arith.constant dense<0.000000e+00> : vector<4xf32>
    %10 = vector.multi_reduction <add>, %7, %cst [1] : vector<4x256xf32> to vector<4xf32>
    %11 = vector.shape_cast %10 : vector<4xf32> to vector<4x1xf32>
    %12 = arith.addf %9, %11 : vector<4x1xf32>
    %c0_9 = arith.constant 0 : index
    %c0_10 = arith.constant 0 : index
    %c0_11 = arith.constant 0 : index
    %13 = vector.load %arg5[%c0_9, %c0_10, %c0_11] : memref<1x4x1xf32, #tpu.memory_space<vmem>>, vector<1x4x1xf32>
    %14 = vector.shape_cast %13 : vector<1x4x1xf32> to vector<4x1xf32>
    %15 = vector.shape_cast %12 : vector<4x1xf32> to vector<1x4x1xf32>
    tpu.vector_store %arg5[%c0_9, %c0_10, %c0_11], %15 {strides = array<i32>} : memref<1x4x1xf32, #tpu.memory_space<vmem>>, vector<1x4x1xf32>,
    return
  }
  func.func @transform_0(%arg0: i32, %arg1: i32, %arg2: i32) -> (i32, i32, i32) {
    %c1_i32 = arith.constant 1 : i32
    %0 = arith.muli %arg1, %c1_i32 : i32
    %1 = arith.addi %0, %arg2 : i32
    %c0_i32 = arith.constant 0 : i32
    %c0_i32_0 = arith.constant 0 : i32
    return %arg0, %c0_i32, %1 : i32, i32, i32
  }
  func.func @transform_1(%arg0: i32, %arg1: i32, %arg2: i32) -> (i32, i32, i32) {
    %c1_i32 = arith.constant 1 : i32
    %0 = arith.muli %arg1, %c1_i32 : i32
    %1 = arith.addi %0, %arg2 : i32
    %c0_i32 = arith.constant 0 : i32
    %c0_i32_0 = arith.constant 0 : i32
    return %arg0, %c0_i32, %1 : i32, i32, i32
  }
  func.func @transform_2(%arg0: i32, %arg1: i32, %arg2: i32) -> (i32, i32, i32) {
    %c1_i32 = arith.constant 1 : i32
    %0 = arith.muli %arg0, %c1_i32 : i32
    %1 = arith.addi %0, %arg1 : i32
    %c0_i32 = arith.constant 0 : i32
    %c0_i32_0 = arith.constant 0 : i32
    %c0_i32_1 = arith.constant 0 : i32
    return %1, %c0_i32, %c0_i32_0 : i32, i32, i32
  }
}

</mosaic_0001>

<llo_original>
// kernel: tpu_custom_call.1
$region0: #{tpu_custom_call.1}
  #allocation0 [shape = 'u32[]', space=smem, size = 0x4, offset = 0x4, fixed_abs, tag = 'smem constant byte address 0x4 - core index']
  #allocation1 [shape = 'u32[72,128]{1,0:T(1,128)}', space=vmem, size = 0x9000, scoped, tag = 'internal scratch']
  %s0 = inlined_call_operand.hbm [shape: f32[2,4,256], index: 0, kind: input, shape index: {}]
  %s1 = inlined_call_operand.hbm [shape: f32[2,4,256], index: 1, kind: input, shape index: {}]
  %s2 = inlined_call_operand.vmem [shape: f32[2,4,1], index: 2, kind: output, shape index: {}]
  %s3 = sld [smem:[#allocation0]]
  $region53: #{tpu_custom_call.1} parent=0
    _
  %s5 = ssub.s32 1, %s3
  %s6 = scalar_select 0, %s5, %s3
  $region1: #{tpu_custom_call.1} parent=0
    #allocation2 [shape = 'u8[8192]{0}', space=vmem, size = 0x2000, scoped, tag = 'input window, operand 0']
    #allocation3 [shape = 's32[2]{0}', space=sflag, size = 0x8, scoped, tag = 'scoped memory for tpu_custom_call.1']
    #allocation4 [shape = 'u8[8192]{0}', space=vmem, size = 0x2000, scoped, tag = 'input window, operand 1']
    #allocation5 [shape = 's32[2]{0}', space=sflag, size = 0x8, scoped, tag = 'scoped memory for tpu_custom_call.1']
    %7 = vsyncpa [#allocation3], 0
    %s8 = scalar_lea.sflag [#allocation3], 1
    %9 = vsyncpa %s8, 0
    %10 = vsyncpa [#allocation5], 0
    %s11 = scalar_lea.sflag [#allocation5], 1
    %12 = vsyncpa %s11, 0
    loop: start=0, step=1, limit=4
    $region2: #{tpu_custom_call.1} parent=1 // loop_pre_header
      _
    $region3: #{tpu_custom_call.1} parent=1 // loop_header
      %s14 = sphi 0, %s18
      %p15 = scmp.ge.s32.totalorder %s14, 4
      %s21 = sphi 0, %s40
      %s22 = sphi 0, %s36
      %s23 = sphi 0, %s32
      %s24 = sphi 0, %s21
      %s25 = sphi 0, %s22
      %s26 = sphi 0, %s23
      %s27 = sphi 0, %s24
      %s28 = sphi 0, %s25
      %s29 = sphi 0, %s26
      %s47 = sphi 0, %s49
      %s50 = sphi 0, %s47
      %s51 = sphi 0, %s50
      %s67 = sphi 0, %s51
      %s77 = sphi 0, %s79
      %s80 = sphi 0, %s77
      %s81 = sphi 0, %s80
      %s97 = sphi 0, %s81
      %s105 = sphi 0, %s107
      %s108 = sphi 0, %s105
      %s109 = sphi 0, %s108
      %s125 = sphi 0, %s109
    $region4: #{tpu_custom_call.1} parent=1 // loop_header_branch
      %17 = sbr.rel (%p15) target = $region8
    $region5: #{tpu_custom_call.1} parent=1 // loop_body
      %s19 = ssub.s32 %s14, 1
      %s20 = ssub.s32 %s14, 2
      %s30 = sadd.s32 1, %s23
      %p31 = scmp.ge.s32.totalorder %s30, 1
      %s32 = scalar_select %p31, 0, %s30
      %s33 = sadd.s32 1, %s22
      %s34 = scalar_select %p31, %s33, %s22
      %p35 = scmp.ge.s32.totalorder %s34, 1
      %s36 = scalar_select %p35, 0, %s34
      %s37 = sadd.s32 1, %s21
      %s38 = scalar_select %p35, %s37, %s21
      %p39 = scmp.ge.s32.totalorder %s38, 2
      %s40 = scalar_select %p39, 0, %s38
      %s41 = sadd.s32 %s22, %s23
      %s42 = sadd.s32 %s36, %s32
      %s43 = ssub.s32 %s21, %s40
      %s44 = ssub.s32 %s41, %s42
      %s45 = sor.u32 %s43, %s44
      %p46 = scmp.eq.s32.totalorder %s45, 0
      %s48 = sadd.s32 %s47, 1
      %s49 = scalar_select %p46, %s47, %s48
      %p52 = pneg %p46
      %p53 = scmp.eq.s32.totalorder %s14, 1
      %p54 = por %p52, %p53
      %p55 = scmp.ne.s32.totalorder %s47, %s50
      %p56 = scmp.eq.s32.totalorder %s14, 0
      %p57 = por %p55, %p56
      %p58 = scmp.ne.s32.totalorder %s47, %s50
      %p59 = scmp.eq.s32.totalorder %s19, 1
      %p60 = por %p58, %p59
      %p61 = scmp.ne.s32.totalorder %s50, %s51
      %p62 = scmp.eq.s32.totalorder %s19, 0
      %p63 = por %p61, %p62
      %p64 = scmp.ne.s32.totalorder %s50, %s51
      %p65 = scmp.eq.s32.totalorder %s20, 1
      %p66 = por %p64, %p65
      %p68 = scmp.ne.s32.totalorder %s51, %s67
      %p69 = scmp.eq.s32.totalorder %s20, 0
      %p70 = por %p68, %p69
      %s71 = sadd.s32 %s22, %s23
      %s72 = sadd.s32 %s36, %s32
      %s73 = ssub.s32 %s21, %s40
      %s74 = ssub.s32 %s71, %s72
      %s75 = sor.u32 %s73, %s74
      %p76 = scmp.eq.s32.totalorder %s75, 0
      %s78 = sadd.s32 %s77, 1
      %s79 = scalar_select %p76, %s77, %s78
      %p82 = pneg %p76
      %p83 = scmp.eq.s32.totalorder %s14, 1
      %p84 = por %p82, %p83
      %p85 = scmp.ne.s32.totalorder %s77, %s80
      %p86 = scmp.eq.s32.totalorder %s14, 0
      %p87 = por %p85, %p86
      %p88 = scmp.ne.s32.totalorder %s77, %s80
      %p89 = scmp.eq.s32.totalorder %s19, 1
      %p90 = por %p88, %p89
      %p91 = scmp.ne.s32.totalorder %s80, %s81
      %p92 = scmp.eq.s32.totalorder %s19, 0
      %p93 = por %p91, %p92
      %p94 = scmp.ne.s32.totalorder %s80, %s81
      %p95 = scmp.eq.s32.totalorder %s20, 1
      %p96 = por %p94, %p95
      %p98 = scmp.ne.s32.totalorder %s81, %s97
      %p99 = scmp.eq.s32.totalorder %s20, 0
      %p100 = por %p98, %p99
      %s101 = sadd.s32 %s21, %s22
      %s102 = sadd.s32 %s40, %s36
      %s103 = ssub.s32 %s101, %s102
      %p104 = scmp.eq.s32.totalorder %s103, 0
      %s106 = sadd.s32 %s105, 1
      %s107 = scalar_select %p104, %s105, %s106
      %p110 = pneg %p104
      %p111 = scmp.eq.s32.totalorder %s14, 1
      %p112 = por %p110, %p111
      %p113 = scmp.ne.s32.totalorder %s105, %s108
      %p114 = scmp.eq.s32.totalorder %s14, 0
      %p115 = por %p113, %p114
      %p116 = scmp.ne.s32.totalorder %s105, %s108
      %p117 = scmp.eq.s32.totalorder %s19, 1
      %p118 = por %p116, %p117
      %p119 = scmp.ne.s32.totalorder %s108, %s109
      %p120 = scmp.eq.s32.totalorder %s19, 0
      %p121 = por %p119, %p120
      %p122 = scmp.ne.s32.totalorder %s108, %s109
      %p123 = scmp.eq.s32.totalorder %s20, 1
      %p124 = por %p122, %p123
      %p126 = scmp.ne.s32.totalorder %s109, %s125
      %p127 = scmp.eq.s32.totalorder %s20, 0
      %p128 = por %p126, %p127
      %p129 = scmp.le.s32.totalorder 1, %s14
      %p130 = scmp.lt.s32.totalorder %s14, 3
      %p131 = pnand %p129, %p130
      %p132 = pneg %p131
      // Predicated region
      $region9: #{tpu_custom_call.1} parent=5 // pred_check
        _
      $region10: #{tpu_custom_call.1} parent=5 // pred_check_branch
        %134 = sbr.rel (%p131) target = $region12
      $region11: #{tpu_custom_call.1} parent=5 // pred_region
        %s135 = ssub.s32 %s14, 1
      $region12: #{tpu_custom_call.1} parent=5 // pred_fallthru
        _
      %p136 = scmp.lt.s32.totalorder %s14, 2
      // Predicated region
      $region13: #{tpu_custom_call.1} parent=5 // pred_check
        %p137 = pneg %p136
      $region14: #{tpu_custom_call.1} parent=5 // pred_check_branch
        %139 = sbr.rel (%p137) target = $region16
      $region15: #{tpu_custom_call.1} parent=5 // pred_region
        // Predicated region
        $region17: #{tpu_custom_call.1} parent=15 // pred_check
          %p140 = pneg %p57
        $region18: #{tpu_custom_call.1} parent=15 // pred_check_branch
          %142 = sbr.rel (%p140) target = $region20
        $region19: #{tpu_custom_call.1} parent=15 // pred_region
          %s143 = sand.u32 %s47, 1
          %s144 = scalar_lea.sflag [#allocation3], %s143
          %s145 = sand.u32 %s47, 1
          %s146 = smul.addr %s145, 8
          %s147 = scalar_lea.vmem [#allocation2], %s146
          %s148 = sadd.s32 %s22, %s23
          %s149 = smul.u32 2, %s148
          %151 = vsyncadd %s144, 0
          %s152 = smul.addr %s21, 2
          %s153 = sadd.s32 %s149, %s152
          %s154 = smul.addr %s153, 4
          %s155 = scalar_lea.hbm %s0, %s154
          %s157 = sshll.u32 %s155, 4
          %s158 = int_to_ptr.hbm [resolvable:$true] %s157
          %s159 = sshll.u32 %s147, 4
          %s160 = int_to_ptr.vmem [resolvable:$true] %s159
          %162 = dma.hbm_to_vmem [thread:$0]  %s158, 128, %s160, %s144
        $region20: #{tpu_custom_call.1} parent=15 // pred_fallthru
          _
        // Predicated region
        $region21: #{tpu_custom_call.1} parent=15 // pred_check
          %p163 = pneg %p87
        $region22: #{tpu_custom_call.1} parent=15 // pred_check_branch
          %165 = sbr.rel (%p163) target = $region24
        $region23: #{tpu_custom_call.1} parent=15 // pred_region
          %s166 = sand.u32 %s77, 1
          %s167 = scalar_lea.sflag [#allocation5], %s166
          %s168 = sand.u32 %s77, 1
          %s169 = smul.addr %s168, 8
          %s170 = scalar_lea.vmem [#allocation4], %s169
          %s171 = sadd.s32 %s22, %s23
          %s172 = smul.u32 2, %s171
          %174 = vsyncadd %s167, 0
          %s175 = smul.addr %s21, 2
          %s176 = sadd.s32 %s172, %s175
          %s177 = smul.addr %s176, 4
          %s178 = scalar_lea.hbm %s1, %s177
          %s180 = sshll.u32 %s178, 4
          %s181 = int_to_ptr.hbm [resolvable:$true] %s180
          %s182 = sshll.u32 %s170, 4
          %s183 = int_to_ptr.vmem [resolvable:$true] %s182
          %185 = dma.hbm_to_vmem [thread:$0]  %s181, 128, %s183, %s167
        $region24: #{tpu_custom_call.1} parent=15 // pred_fallthru
          _
      $region16: #{tpu_custom_call.1} parent=5 // pred_fallthru
        _
      %p186 = scmp.le.s32.totalorder 1, %s14
      %p187 = scmp.lt.s32.totalorder %s14, 3
      %p188 = pnand %p186, %p187
      %p189 = pneg %p188
      // Predicated region
      $region25: #{tpu_custom_call.1} parent=5 // pred_check
        _
      $region26: #{tpu_custom_call.1} parent=5 // pred_check_branch
        %191 = sbr.rel (%p188) target = $region28
      $region27: #{tpu_custom_call.1} parent=5 // pred_region
        %s192 = ssub.s32 %s14, 1
        %s193 = sand.u32 %s50, 1
        %s194 = scalar_lea.sflag [#allocation3], %s193
        %s195 = sand.u32 %s50, 1
        %s196 = smul.addr %s195, 8
        %s197 = scalar_lea.vmem [#allocation2], %s196
        // Predicated region
        $region29: #{tpu_custom_call.1} parent=27 // pred_check
          %p198 = pneg %p63
        $region30: #{tpu_custom_call.1} parent=27 // pred_check_branch
          %200 = sbr.rel (%p198) target = $region32
        $region31: #{tpu_custom_call.1} parent=27 // pred_region
          %202 = dma.done %s194, 128
        $region32: #{tpu_custom_call.1} parent=27 // pred_fallthru
          _
        %s203 = sand.u32 %s80, 1
        %s204 = scalar_lea.sflag [#allocation5], %s203
        %s205 = sand.u32 %s80, 1
        %s206 = smul.addr %s205, 8
        %s207 = scalar_lea.vmem [#allocation4], %s206
        // Predicated region
        $region33: #{tpu_custom_call.1} parent=27 // pred_check
          %p208 = pneg %p93
        $region34: #{tpu_custom_call.1} parent=27 // pred_check_branch
          %210 = sbr.rel (%p208) target = $region36
        $region35: #{tpu_custom_call.1} parent=27 // pred_region
          %212 = dma.done %s204, 128
        $region36: #{tpu_custom_call.1} parent=27 // pred_fallthru
          _
        %s213 = sand.u32 %s50, 1
        %s214 = scalar_lea.sflag [#allocation3], %s213
        %s215 = sand.u32 %s50, 1
        %s216 = smul.addr %s215, 8
        %s217 = scalar_lea.vmem [#allocation2], %s216
        %p218 = pneg %p63
        %p219 = pneg %p60
        %s220 = sand.u32 %s80, 1
        %s221 = scalar_lea.sflag [#allocation5], %s220
        %s222 = sand.u32 %s80, 1
        %s223 = smul.addr %s222, 8
        %s224 = scalar_lea.vmem [#allocation4], %s223
        %p225 = pneg %p93
        %p226 = pneg %p90
        %p227 = pneg %p121
        %p228 = pneg %p118
        %s229 = sadd.s32 %s24, %s25
        %p230 = scmp.lt.s32.totalorder %s229, 1
        %s231 = scalar_select %p230, %s229, 1
        %s232 = smul.addr %s231, 4
        %s233 = scalar_lea.vmem %s2, %s232
        %s234 = sadd.s32 %s25, %s26
        %s235 = smul.u32 2, %s234
        %s236 = sadd.s32 %s25, %s26
        %s237 = smul.u32 2, %s236
        %s238 = sadd.s32 %s24, %s25
        %p239 = scmp.lt.s32.totalorder %s238, 1
        %s240 = scalar_select %p239, %s238, 1
        %s241 = smul.addr %s240, 4
        %s242 = scalar_lea.vmem %s2, %s241
        %s243 = sadd.s32 %s24, %s25
        %p244 = scmp.eq.s32.totalorder %s26, 0
        // Predicated region
        $region37: #{tpu_custom_call.1} parent=27 // pred_check
          %p245 = pneg %p244
        $region38: #{tpu_custom_call.1} parent=27 // pred_check_branch
          %247 = sbr.rel (%p245) target = $region40
        $region39: #{tpu_custom_call.1} parent=27 // pred_region
          %vm248 = vcmask 3072
          %249 = vst.msk [vmem:[%s242] sm:$0xf] %vm248, 0.0
        $region40: #{tpu_custom_call.1} parent=27 // pred_fallthru
          _
        %v250 = vld [vmem:[%s197] sm:$0xff]
        %v251 = vld [vmem:[%s207] sm:$0xff]
        %v252 = vadd.f32 %v250, %v251
        %v253 = vld [vmem:[%s242] sm:$0xf]
        %255 = vst [vmem:[#allocation1] ss:$2 sm:$0xff] %v252
        %v256 = vld.sshfl [vmem:[#allocation1] sm:$0xff pattern:$0x75316420]
        %v257 = vld.sshfl [vmem:[#allocation1 + $0x8] sm:$0xff pattern:$0x75316420]
        %vm260 = vcmask 1043456
        %v261 = vsel %vm260, %v256, 0.0
        %v262 = vsel %vm260, %v257, 0.0
        %v263 = vadd.f32 %v261, %v262
        %264 = vadd.xlane.f32.xlu0 %v263
        %v265 = vpop.xlane.xlu0 %264
        %v266 = vadd.f32 %v253, %v265
        %vm267 = vcmask 3072
        %268 = vst.msk [vmem:[%s242] sm:$0xf] %vm267, %v266
        %s269 = sadd.s32 %s24, %s25
        %p270 = scmp.lt.s32.totalorder %s269, 1
        %s271 = scalar_select %p270, %s269, 1
        %s272 = smul.addr %s271, 4
        %s273 = scalar_lea.vmem %s2, %s272
        // Predicated region
        $region41: #{tpu_custom_call.1} parent=27 // pred_check
          %p274 = pneg %p118
        $region42: #{tpu_custom_call.1} parent=27 // pred_check_branch
          %276 = sbr.rel (%p274) target = $region44
        $region43: #{tpu_custom_call.1} parent=27 // pred_region
          %s277 = sadd.s32 %s24, %s25
        $region44: #{tpu_custom_call.1} parent=27 // pred_fallthru
          _
      $region28: #{tpu_custom_call.1} parent=5 // pred_fallthru
        _
      %p278 = scmp.le.s32.totalorder 2, %s14
      // Predicated region
      $region45: #{tpu_custom_call.1} parent=5 // pred_check
        %p279 = pneg %p278
      $region46: #{tpu_custom_call.1} parent=5 // pred_check_branch
        %281 = sbr.rel (%p279) target = $region48
      $region47: #{tpu_custom_call.1} parent=5 // pred_region
        %s282 = ssub.s32 %s14, 2
        // Predicated region
        $region49: #{tpu_custom_call.1} parent=47 // pred_check
          %p283 = pneg %p124
        $region50: #{tpu_custom_call.1} parent=47 // pred_check_branch
          %285 = sbr.rel (%p283) target = $region52
        $region51: #{tpu_custom_call.1} parent=47 // pred_region
          %s286 = sadd.s32 %s27, %s28
          %p287 = scmp.lt.s32.totalorder %s286, 1
          %s288 = scalar_select %p287, %s286, 1
          %s289 = smul.addr %s288, 4
          %s290 = scalar_lea.vmem %s2, %s289
        $region52: #{tpu_custom_call.1} parent=47 // pred_fallthru
          _
      $region48: #{tpu_custom_call.1} parent=5 // pred_fallthru
        _
    $region6: #{tpu_custom_call.1} parent=1 // loop_footer
      %s18 = sadd.s32 1, %s14
    $region7: #{tpu_custom_call.1} parent=1 // loop_footer_branch
      %13 = sbr.rel target = $region3
    $region8: #{tpu_custom_call.1} parent=1 // loop_exit
      _
    %291 = vsyncpa [#allocation3], 1
    %s292 = scalar_lea.sflag [#allocation3], 1
    %293 = vsyncpa %s292, 1
    %294 = vsyncpa [#allocation5], 1
    %s295 = scalar_lea.sflag [#allocation5], 1
    %296 = vsyncpa %s295, 1

</llo_original>
